<compile_context>
chip_gen: v5e
topology: v5e:2x2
jax: 0.10.0
libtpu: 0.0.40
codegen_flags: <defaults>
</compile_context>

<pallas_src>
import jax
import jax.numpy as jnp
from jax.experimental import pallas as pl
from jax.experimental.pallas import tpu as pltpu

_MIB = 1024 * 1024
_FUSED_UNROLL_LAYERS = 6  # static unroll up to this depth, fori_loop beyond


def _round_up(v, m):
    return (v + m - 1) // m * m


def _vmem_capacity_bytes():
    """Per-core VMEM capacity; conservative 64 MiB (v7x) fallback."""
    default = 64 * _MIB
    try:
        info = pltpu.get_tpu_info()
    except Exception:
        return default
    for attr in ("vmem_capacity_bytes", "vmem_size_bytes", "vmem_bytes"):
        val = getattr(info, attr, None)
        if val:
            return int(val)
    return default


def _fused_vmem_bytes(n_layers, hp, tile_m, single_buffer_weights):
    wfac = 1 if single_buffer_weights else 2          # default Pallas double-buffering
    w = n_layers * hp * hp * 2 * wfac                 # bf16 weight stack
    b = n_layers * hp * 4 * wfac                      # f32 bias stack
    x_blk = 2 * tile_m * hp * 2                       # bf16 input block (double-buffered)
    o_blk = 2 * tile_m * hp * 4                       # f32 output block (double-buffered)
    act = 2 * tile_m * hp * 4                         # live activation / accumulator headroom
    return w + b + x_blk + o_blk + act


def _tiled_vmem_bytes(hp, tile_m, tile_n):
    x_blk = 2 * tile_m * hp * 2                       # bf16 input block
    o_blk = 2 * tile_m * hp * 4                       # f32 output block
    w_blk = 2 * hp * tile_n * 2                       # bf16 streamed weight tile
    b_blk = 2 * tile_n * 4
    scratch = 2 * tile_m * hp * 2                     # bf16 ping-pong activations
    return x_blk + o_blk + w_blk + b_blk + scratch


# ---------------------------------------------------------------------------
# Fused path: whole (L, Hp, Hp) bf16 weight stack resident in VMEM, one grid
# step per batch tile.  Activations stay bf16 between layers; the last layer's
# f32 result is stored directly to the output.
# ---------------------------------------------------------------------------
def _fused_kernel(x_ref, w_ref, b_ref, o_ref):
    num_layers = w_ref.shape[0]
    h = x_ref[...]                                    # (tile_m, hp) bf16

    def layer(l_idx, h_in):
        y = jnp.dot(h_in, w_ref[l_idx], preferred_element_type=jnp.float32)
        return jnp.maximum(y + b_ref[l_idx], 0.0)     # bias + ReLU in f32

    if num_layers <= _FUSED_UNROLL_LAYERS:
        for l in range(num_layers - 1):               # static -> unrolled
            h = layer(l, h).astype(jnp.bfloat16)
    else:
        # Deep stacks: fori_loop bounds live ranges / code size.
        def body(l, carry):
            return layer(l, carry).astype(jnp.bfloat16)

        h = jax.lax.fori_loop(0, num_layers - 1, body, h)

    # Final layer stays f32 for the output store.
    o_ref[...] = layer(num_layers - 1, h).astype(o_ref.dtype)


def _ddp_forward_fused(x, w_bf16, b, out_dtype, tile_m, vmem_limit,
                       single_buffer_weights):
    bp, hp = x.shape
    n_layers = w_bf16.shape[0]

    if single_buffer_weights:
        # Constant-index blocks: double buffering would just duplicate the
        # whole stack in VMEM, so request a single buffer.
        w_spec = pl.BlockSpec((n_layers, hp, hp), lambda m: (0, 0, 0),
                              pipeline_mode=pl.Buffered(1))
        b_spec = pl.BlockSpec((n_layers, 1, hp), lambda m: (0, 0, 0),
                              pipeline_mode=pl.Buffered(1))
    else:
        w_spec = pl.BlockSpec((n_layers, hp, hp), lambda m: (0, 0, 0))
        b_spec = pl.BlockSpec((n_layers, 1, hp), lambda m: (0, 0, 0))

    return pl.pallas_call(
        _fused_kernel,
        out_shape=jax.ShapeDtypeStruct((bp, hp), out_dtype),
        grid_spec=pltpu.PrefetchScalarGridSpec(
            num_scalar_prefetch=0,
            grid=(bp // tile_m,),
            in_specs=[
                pl.BlockSpec((tile_m, hp), lambda m: (m, 0)),
                w_spec,
                b_spec,
            ],
            out_specs=pl.BlockSpec((tile_m, hp), lambda m: (m, 0)),
        ),
        compiler_params=pltpu.CompilerParams(
            dimension_semantics=("parallel",),        # batch tiles across TCs (v7x)
            vmem_limit_bytes=vmem_limit,
        ),
    )(x, w_bf16, b)


# ---------------------------------------------------------------------------
# Tiled path: grid = (batch tiles, layers, N tiles).  Per-layer weights are
# streamed in (Hp, TILE_N) bf16 tiles; the running activation lives in a bf16
# (2, tile_m, hp) ping-pong scratch indexed by layer parity, so there is no
# inter-layer copy and VMEM use is bounded independently of H.
# ---------------------------------------------------------------------------
def _tiled_kernel(x_ref, w_ref, b_ref, o_ref, h_ref):
    l = pl.program_id(1)
    n = pl.program_id(2)
    last_l = pl.num_programs(1) - 1
    tile_n = w_ref.shape[1]                           # (hp, tile_n)

    # New batch tile: load its (already bf16) input into the ping buffer.
    @pl.when(jnp.logical_and(l == 0, n == 0))
    def _():
        h_ref[0] = x_ref[...]

    read_slot = l % 2
    lhs = h_ref[read_slot]                            # (tile_m, hp) bf16
    y = jnp.dot(lhs, w_ref[...], preferred_element_type=jnp.float32)
    y = jnp.maximum(y + b_ref[...], 0.0)              # (tile_m, tile_n) f32

    start = pl.multiple_of(n * tile_n, tile_n)

    # Intermediate layers: write the bf16 result into the pong buffer.
    @pl.when(l != last_l)
    def _():
        h_ref[1 - read_slot, :, pl.ds(start, tile_n)] = y.astype(h_ref.dtype)

    # Last layer: store the f32 result directly into the resident output block.
    @pl.when(l == last_l)
    def _():
        o_ref[:, pl.ds(start, tile_n)] = y.astype(o_ref.dtype)


def _ddp_forward_tiled(x, w_bf16, b, out_dtype, tile_m, tile_n, vmem_limit):
    bp, hp = x.shape
    n_layers = w_bf16.shape[0]
    return pl.pallas_call(
        _tiled_kernel,
        out_shape=jax.ShapeDtypeStruct((bp, hp), out_dtype),
        grid_spec=pltpu.PrefetchScalarGridSpec(
            num_scalar_prefetch=0,
            grid=(bp // tile_m, n_layers, hp // tile_n),
            in_specs=[
                pl.BlockSpec((tile_m, hp), lambda m, l, n: (m, 0)),
                # Per-(layer, N-tile) weight slice; layer dim squeezed out.
                # TODO(synk): pipeline_mode=pl.Buffered(3) on the weight stream
                # is worth it on v5e only (slow HBM, ample 128 MiB VMEM).
                pl.BlockSpec((None, hp, tile_n), lambda m, l, n: (l, 0, n)),
                pl.BlockSpec((None, 1, tile_n), lambda m, l, n: (l, 0, n)),
            ],
            out_specs=pl.BlockSpec((tile_m, hp), lambda m, l, n: (m, 0)),
            scratch_shapes=[
                pltpu.VMEM((2, tile_m, hp), jnp.bfloat16),   # ping-pong activations
            ],
        ),
        compiler_params=pltpu.CompilerParams(
            dimension_semantics=("parallel", "arbitrary", "arbitrary"),
            vmem_limit_bytes=vmem_limit,
        ),
    )(x, w_bf16, b)


def ddp_forward(x, weights, biases, *, force_tiled=False):
    """
    Forward pass of the DDP-wrapped block-stack model:
        h_0 = x;  h_{l+1} = relu(h_l @ W_l + b_l);  return h_L
    x:       (B, H)     float32
    weights: (L, H, H)  stored as (in, out) (already transposed)
    biases:  (L, 1, H)  or (L, H)
    """
    B, H = x.shape
    L = weights.shape[0]
    biases = biases.reshape(L, 1, H)
    out_dtype = x.dtype

    # Generation-aware VMEM budget (v5e/v6e: 128 MiB -> ~100 MiB usable;
    # v7x: 64 MiB -> ~56 MiB).
    vmem_cap = _vmem_capacity_bytes()
    vmem_limit = min(vmem_cap - 8 * _MIB, 100 * _MIB)

    # Lane-dense padding: H -> multiple of 128 (lanes).  Zero-padded weight
    # rows/cols and biases keep padded activation lanes exactly zero through
    # every ReLU layer, so the active region is unchanged; zero-padded batch
    # rows are simply sliced away.
    hp = _round_up(H, 128)
    tile_n = 256 if hp % 256 == 0 else 128            # never 512 (v5e MXU is 128-wide)

    # tile_m: fill the MXU (>=128, cap 256) and pad B up to it.  Small batches
    # get a single tile (weight-stream-bound regime: weights streamed once);
    # batches > 256 split into >=2 "parallel" tiles feeding both v7x TCs.
    tile_m = min(256, _round_up(B, 128))
    while tile_m > 64 and _tiled_vmem_bytes(hp, tile_m, tile_n) > int(0.85 * vmem_limit):
        tile_m //= 2
    bp = _round_up(B, tile_m)

    x_p = jnp.pad(x, ((0, bp - B), (0, hp - H))).astype(jnp.bfloat16)
    w_p = jnp.pad(weights, ((0, 0), (0, hp - H), (0, hp - H))).astype(jnp.bfloat16)
    b_p = jnp.pad(biases, ((0, 0), (0, 0), (0, hp - H))).astype(jnp.float32)

    fused_budget = int(0.75 * vmem_limit)
    out_p = None
    if not force_tiled and _fused_vmem_bytes(L, hp, tile_m, True) <= fused_budget:
        try:
            out_p = _ddp_forward_fused(x_p, w_p, b_p, out_dtype, tile_m,
                                       vmem_limit, single_buffer_weights=True)
        except Exception:
            # pl.Buffered(1) not supported on this jax/Mosaic version: retry
            # with default double-buffered constant blocks if they still fit.
            if _fused_vmem_bytes(L, hp, tile_m, False) <= fused_budget:
                out_p = _ddp_forward_fused(x_p, w_p, b_p, out_dtype, tile_m,
                                           vmem_limit, single_buffer_weights=False)
    if out_p is None:
        out_p = _ddp_forward_tiled(x_p, w_p, b_p, out_dtype, tile_m, tile_n,
                                   vmem_limit)

    return out_p[:B, :H]


if __name__ == "__main__":
    # TODO(synk): GradientBucket all-reduce / dist.broadcast / gradient hooks
    # are backward-time collectives with no forward-pass semantics; not translated.

    def reference(x, weights, biases):
        # Same numerics as the kernels: bf16 matmul inputs, f32 accumulation,
        # f32 bias + ReLU, final layer kept in f32.
        h = x
        for l in range(weights.shape[0]):
            y = jnp.dot(h.astype(jnp.bfloat16), weights[l].astype(jnp.bfloat16),
                        preferred_element_type=jnp.float32) + biases[l]
            h = jnp.maximum(y, 0.0)
        return h

    key = jax.random.PRNGKey(0)
    cases = [
        (8, 32, 3),      # small model: fused path, static unroll
        (16, 512, 4),    # multiple N tiles exercised in the streaming path
        (4, 32, 10),     # deep stack: fused path uses the fori_loop body
    ]
    for B, H, L in cases:
        kx, kw, kb, key = jax.random.split(key, 4)
        scale = 0.5 / (H ** 0.5)
        x = jax.random.normal(kx, (B, H), dtype=jnp.float32)
        weights = jax.random.normal(kw, (L, H, H), dtype=jnp.float32) * scale
        biases = jax.random.normal(kb, (L, 1, H), dtype=jnp.float32) * 0.1

        ref = reference(x, weights, biases)
        out_fused = ddp_forward(x, weights, biases)                    # fused (or fallback)
        out_tiled = ddp_forward(x, weights, biases, force_tiled=True)  # streaming path
        jax.block_until_ready((out_fused, out_tiled, ref))

        assert out_fused.shape == (B, H) and out_tiled.shape == (B, H)
        assert jnp.allclose(out_fused, ref, atol=1e-2, rtol=1e-2), \
            f"fused path mismatch (B={B}, H={H}, L={L})"
        assert jnp.allclose(out_tiled, ref, atol=1e-2, rtol=1e-2), \
            f"tiled path mismatch (B={B}, H={H}, L={L})"

    print("KERNEL_OK")
</pallas_src>

<mosaic_0001>
module attributes {stable_mosaic.version = 11 : i64} {
  func.func @_fused_kernel(%arg0: i32, %arg1: memref<128x128xbf16, #tpu.memory_space<vmem>>, %arg2: memref<3x128x128xbf16, #tpu.memory_space<vmem>>, %arg3: memref<3x1x128xf32, #tpu.memory_space<vmem>>, %arg4: memref<128x128xf32, #tpu.memory_space<vmem>>) attributes {dimension_semantics = [#tpu.dimension_semantics<parallel>], iteration_bounds = array<i64: 1>, scalar_prefetch = 0 : i64, scratch_operands = 0 : i64, tpu.core_type = #tpu.core_type<tc>, window_params = [{transform_indices = @transform_0, window_bounds = array<i64: 128, 128>}, {pipeline_mode = #tpu.pipeline_mode<synchronous>, transform_indices = @transform_1, window_bounds = array<i64: 3, 128, 128>}, {pipeline_mode = #tpu.pipeline_mode<synchronous>, transform_indices = @transform_2, window_bounds = array<i64: 3, 1, 128>}, {transform_indices = @transform_3, window_bounds = array<i64: 128, 128>}]} {
    %c0 = arith.constant 0 : index
    %c0_0 = arith.constant 0 : index
    %0 = vector.load %arg1[%c0, %c0_0] : memref<128x128xbf16, #tpu.memory_space<vmem>>, vector<128x128xbf16>
    %c0_1 = arith.constant 0 : index
    %c0_2 = arith.constant 0 : index
    %c0_3 = arith.constant 0 : index
    %1 = vector.load %arg2[%c0_1, %c0_2, %c0_3] : memref<3x128x128xbf16, #tpu.memory_space<vmem>>, vector<1x128x128xbf16>
    %2 = vector.shape_cast %1 : vector<1x128x128xbf16> to vector<128x128xbf16>
    %cst = arith.constant dense<0.000000e+00> : vector<128x128xf32>
    %3 = tpu.matmul %0, %2, %cst {dimension_numbers = #tpu.dot_dimension_numbers<[1], [0], [0], [1], [0, 0, 1, 1], [], []>} : vector<128x128xbf16>, vector<128x128xbf16>, vector<128x128xf32> -> vector<128x128xf32>
    %c0_4 = arith.constant 0 : index
    %c0_5 = arith.constant 0 : index
    %c0_6 = arith.constant 0 : index
    %4 = vector.load %arg3[%c0_4, %c0_5, %c0_6] : memref<3x1x128xf32, #tpu.memory_space<vmem>>, vector<1x1x128xf32>
    %5 = vector.shape_cast %4 : vector<1x1x128xf32> to vector<1x128xf32>
    %6 = vector.broadcast %5 : vector<1x128xf32> to vector<128x128xf32>
    %7 = arith.addf %3, %6 : vector<128x128xf32>
    %cst_7 = arith.constant 0.000000e+00 : f32
    %8 = vector.broadcast %cst_7 : f32 to vector<128x128xf32>
    %9 = arith.maximumf %7, %8 : vector<128x128xf32>
    %10 = arith.truncf %9 : vector<128x128xf32> to vector<128x128xbf16>
    %c1 = arith.constant 1 : index
    %c0_8 = arith.constant 0 : index
    %c0_9 = arith.constant 0 : index
    %11 = vector.load %arg2[%c1, %c0_8, %c0_9] : memref<3x128x128xbf16, #tpu.memory_space<vmem>>, vector<1x128x128xbf16>
    %12 = vector.shape_cast %11 : vector<1x128x128xbf16> to vector<128x128xbf16>
    %cst_10 = arith.constant dense<0.000000e+00> : vector<128x128xf32>
    %13 = tpu.matmul %10, %12, %cst_10 {dimension_numbers = #tpu.dot_dimension_numbers<[1], [0], [0], [1], [0, 0, 1, 1], [], []>} : vector<128x128xbf16>, vector<128x128xbf16>, vector<128x128xf32> -> vector<128x128xf32>
    %c1_11 = arith.constant 1 : index
    %c0_12 = arith.constant 0 : index
    %c0_13 = arith.constant 0 : index
    %14 = vector.load %arg3[%c1_11, %c0_12, %c0_13] : memref<3x1x128xf32, #tpu.memory_space<vmem>>, vector<1x1x128xf32>
    %15 = vector.shape_cast %14 : vector<1x1x128xf32> to vector<1x128xf32>
    %16 = vector.broadcast %15 : vector<1x128xf32> to vector<128x128xf32>
    %17 = arith.addf %13, %16 : vector<128x128xf32>
    %cst_14 = arith.constant 0.000000e+00 : f32
    %18 = vector.broadcast %cst_14 : f32 to vector<128x128xf32>
    %19 = arith.maximumf %17, %18 : vector<128x128xf32>
    %20 = arith.truncf %19 : vector<128x128xf32> to vector<128x128xbf16>
    %c2 = arith.constant 2 : index
    %c0_15 = arith.constant 0 : index
    %c0_16 = arith.constant 0 : index
    %21 = vector.load %arg2[%c2, %c0_15, %c0_16] : memref<3x128x128xbf16, #tpu.memory_space<vmem>>, vector<1x128x128xbf16>
    %22 = vector.shape_cast %21 : vector<1x128x128xbf16> to vector<128x128xbf16>
    %cst_17 = arith.constant dense<0.000000e+00> : vector<128x128xf32>
    %23 = tpu.matmul %20, %22, %cst_17 {dimension_numbers = #tpu.dot_dimension_numbers<[1], [0], [0], [1], [0, 0, 1, 1], [], []>} : vector<128x128xbf16>, vector<128x128xbf16>, vector<128x128xf32> -> vector<128x128xf32>
    %c2_18 = arith.constant 2 : index
    %c0_19 = arith.constant 0 : index
    %c0_20 = arith.constant 0 : index
    %24 = vector.load %arg3[%c2_18, %c0_19, %c0_20] : memref<3x1x128xf32, #tpu.memory_space<vmem>>, vector<1x1x128xf32>
    %25 = vector.shape_cast %24 : vector<1x1x128xf32> to vector<1x128xf32>
    %26 = vector.broadcast %25 : vector<1x128xf32> to vector<128x128xf32>
    %27 = arith.addf %23, %26 : vector<128x128xf32>
    %cst_21 = arith.constant 0.000000e+00 : f32
    %28 = vector.broadcast %cst_21 : f32 to vector<128x128xf32>
    %29 = arith.maximumf %27, %28 : vector<128x128xf32>
    %c0_22 = arith.constant 0 : index
    %c0_23 = arith.constant 0 : index
    %30 = vector.load %arg4[%c0_22, %c0_23] : memref<128x128xf32, #tpu.memory_space<vmem>>, vector<128x128xf32>
    tpu.vector_store %arg4[%c0_22, %c0_23], %29 {strides = array<i32>} : memref<128x128xf32, #tpu.memory_space<vmem>>, vector<128x128xf32>,
    return
  }
  func.func @transform_0(%arg0: i32) -> (i32, i32) {
    %c0_i32 = arith.constant 0 : i32
    %c0_i32_0 = arith.constant 0 : i32
    return %arg0, %c0_i32 : i32, i32
  }
  func.func @transform_1(%arg0: i32) -> (i32, i32, i32) {
    %c0_i32 = arith.constant 0 : i32
    %c0_i32_0 = arith.constant 0 : i32
    %c0_i32_1 = arith.constant 0 : i32
    %c0_i32_2 = arith.constant 0 : i32
    return %c0_i32, %c0_i32_0, %c0_i32_1 : i32, i32, i32
  }
  func.func @transform_2(%arg0: i32) -> (i32, i32, i32) {
    %c0_i32 = arith.constant 0 : i32
    %c0_i32_0 = arith.constant 0 : i32
    %c0_i32_1 = arith.constant 0 : i32
    %c0_i32_2 = arith.constant 0 : i32
    return %c0_i32, %c0_i32_0, %c0_i32_1 : i32, i32, i32
  }
  func.func @transform_3(%arg0: i32) -> (i32, i32) {
    %c0_i32 = arith.constant 0 : i32
    %c0_i32_0 = arith.constant 0 : i32
    return %arg0, %c0_i32 : i32, i32
  }
}

module attributes {stable_mosaic.version = 11 : i64} {
  func.func @_fused_kernel(%arg0: i32, %arg1: memref<128x128xbf16, #tpu.memory_space<vmem>>, %arg2: memref<3x128x128xbf16, #tpu.memory_space<vmem>>, %arg3: memref<3x1x128xf32, #tpu.memory_space<vmem>>, %arg4: memref<128x128xf32, #tpu.memory_space<vmem>>) attributes {dimension_semantics = [#tpu.dimension_semantics<parallel>], iteration_bounds = array<i64: 1>, scalar_prefetch = 0 : i64, scratch_operands = 0 : i64, tpu.core_type = #tpu.core_type<tc>, window_params = [{transform_indices = @transform_0, window_bounds = array<i64: 128, 128>}, {pipeline_mode = #tpu.pipeline_mode<synchronous>, transform_indices = @transform_1, window_bounds = array<i64: 3, 128, 128>}, {pipeline_mode = #tpu.pipeline_mode<synchronous>, transform_indices = @transform_2, window_bounds = array<i64: 3, 1, 128>}, {transform_indices = @transform_3, window_bounds = array<i64: 128, 128>}]} {
    %c0 = arith.constant 0 : index
    %c0_0 = arith.constant 0 : index
    %0 = vector.load %arg1[%c0, %c0_0] : memref<128x128xbf16, #tpu.memory_space<vmem>>, vector<128x128xbf16>
    %c0_1 = arith.constant 0 : index
    %c0_2 = arith.constant 0 : index
    %c0_3 = arith.constant 0 : index
    %1 = vector.load %arg2[%c0_1, %c0_2, %c0_3] : memref<3x128x128xbf16, #tpu.memory_space<vmem>>, vector<1x128x128xbf16>
    %2 = vector.shape_cast %1 : vector<1x128x128xbf16> to vector<128x128xbf16>
    %cst = arith.constant dense<0.000000e+00> : vector<128x128xf32>
    %3 = tpu.matmul %0, %2, %cst {dimension_numbers = #tpu.dot_dimension_numbers<[1], [0], [0], [1], [0, 0, 1, 1], [], []>} : vector<128x128xbf16>, vector<128x128xbf16>, vector<128x128xf32> -> vector<128x128xf32>
    %c0_4 = arith.constant 0 : index
    %c0_5 = arith.constant 0 : index
    %c0_6 = arith.constant 0 : index
    %4 = vector.load %arg3[%c0_4, %c0_5, %c0_6] : memref<3x1x128xf32, #tpu.memory_space<vmem>>, vector<1x1x128xf32>
    %5 = vector.shape_cast %4 : vector<1x1x128xf32> to vector<1x128xf32>
    %6 = vector.broadcast %5 : vector<1x128xf32> to vector<128x128xf32>
    %7 = arith.addf %3, %6 : vector<128x128xf32>
    %cst_7 = arith.constant 0.000000e+00 : f32
    %8 = vector.broadcast %cst_7 : f32 to vector<128x128xf32>
    %9 = arith.maximumf %7, %8 : vector<128x128xf32>
    %10 = arith.truncf %9 : vector<128x128xf32> to vector<128x128xbf16>
    %c1 = arith.constant 1 : index
    %c0_8 = arith.constant 0 : index
    %c0_9 = arith.constant 0 : index
    %11 = vector.load %arg2[%c1, %c0_8, %c0_9] : memref<3x128x128xbf16, #tpu.memory_space<vmem>>, vector<1x128x128xbf16>
    %12 = vector.shape_cast %11 : vector<1x128x128xbf16> to vector<128x128xbf16>
    %cst_10 = arith.constant dense<0.000000e+00> : vector<128x128xf32>
    %13 = tpu.matmul %10, %12, %cst_10 {dimension_numbers = #tpu.dot_dimension_numbers<[1], [0], [0], [1], [0, 0, 1, 1], [], []>} : vector<128x128xbf16>, vector<128x128xbf16>, vector<128x128xf32> -> vector<128x128xf32>
    %c1_11 = arith.constant 1 : index
    %c0_12 = arith.constant 0 : index
    %c0_13 = arith.constant 0 : index
    %14 = vector.load %arg3[%c1_11, %c0_12, %c0_13] : memref<3x1x128xf32, #tpu.memory_space<vmem>>, vector<1x1x128xf32>
    %15 = vector.shape_cast %14 : vector<1x1x128xf32> to vector<1x128xf32>
    %16 = vector.broadcast %15 : vector<1x128xf32> to vector<128x128xf32>
    %17 = arith.addf %13, %16 : vector<128x128xf32>
    %cst_14 = arith.constant 0.000000e+00 : f32
    %18 = vector.broadcast %cst_14 : f32 to vector<128x128xf32>
    %19 = arith.maximumf %17, %18 : vector<128x128xf32>
    %20 = arith.truncf %19 : vector<128x128xf32> to vector<128x128xbf16>
    %c2 = arith.constant 2 : index
    %c0_15 = arith.constant 0 : index
    %c0_16 = arith.constant 0 : index
    %21 = vector.load %arg2[%c2, %c0_15, %c0_16] : memref<3x128x128xbf16, #tpu.memory_space<vmem>>, vector<1x128x128xbf16>
    %22 = vector.shape_cast %21 : vector<1x128x128xbf16> to vector<128x128xbf16>
    %cst_17 = arith.constant dense<0.000000e+00> : vector<128x128xf32>
    %23 = tpu.matmul %20, %22, %cst_17 {dimension_numbers = #tpu.dot_dimension_numbers<[1], [0], [0], [1], [0, 0, 1, 1], [], []>} : vector<128x128xbf16>, vector<128x128xbf16>, vector<128x128xf32> -> vector<128x128xf32>
    %c2_18 = arith.constant 2 : index
    %c0_19 = arith.constant 0 : index
    %c0_20 = arith.constant 0 : index
    %24 = vector.load %arg3[%c2_18, %c0_19, %c0_20] : memref<3x1x128xf32, #tpu.memory_space<vmem>>, vector<1x1x128xf32>
    %25 = vector.shape_cast %24 : vector<1x1x128xf32> to vector<1x128xf32>
    %26 = vector.broadcast %25 : vector<1x128xf32> to vector<128x128xf32>
    %27 = arith.addf %23, %26 : vector<128x128xf32>
    %cst_21 = arith.constant 0.000000e+00 : f32
    %28 = vector.broadcast %cst_21 : f32 to vector<128x128xf32>
    %29 = arith.maximumf %27, %28 : vector<128x128xf32>
    %c0_22 = arith.constant 0 : index
    %c0_23 = arith.constant 0 : index
    %30 = vector.load %arg4[%c0_22, %c0_23] : memref<128x128xf32, #tpu.memory_space<vmem>>, vector<128x128xf32>
    tpu.vector_store %arg4[%c0_22, %c0_23], %29 {strides = array<i32>} : memref<128x128xf32, #tpu.memory_space<vmem>>, vector<128x128xf32>,
    return
  }
  func.func @transform_0(%arg0: i32) -> (i32, i32) {
    %c0_i32 = arith.constant 0 : i32
    %c0_i32_0 = arith.constant 0 : i32
    return %arg0, %c0_i32 : i32, i32
  }
  func.func @transform_1(%arg0: i32) -> (i32, i32, i32) {
    %c0_i32 = arith.constant 0 : i32
    %c0_i32_0 = arith.constant 0 : i32
    %c0_i32_1 = arith.constant 0 : i32
    %c0_i32_2 = arith.constant 0 : i32
    return %c0_i32, %c0_i32_0, %c0_i32_1 : i32, i32, i32
  }
  func.func @transform_2(%arg0: i32) -> (i32, i32, i32) {
    %c0_i32 = arith.constant 0 : i32
    %c0_i32_0 = arith.constant 0 : i32
    %c0_i32_1 = arith.constant 0 : i32
    %c0_i32_2 = arith.constant 0 : i32
    return %c0_i32, %c0_i32_0, %c0_i32_1 : i32, i32, i32
  }
  func.func @transform_3(%arg0: i32) -> (i32, i32) {
    %c0_i32 = arith.constant 0 : i32
    %c0_i32_0 = arith.constant 0 : i32
    return %arg0, %c0_i32 : i32, i32
  }
}

</mosaic_0001>

<llo_original>
// kernel: tpu_custom_call.1
$region0: #{tpu_custom_call.1}
  #allocation0 [shape = 'u32[]', space=smem, size = 0x4, offset = 0x4, fixed_abs, tag = 'smem constant byte address 0x4 - core index']
  #allocation1 [shape = 'u32[72,128]{1,0:T(1,128)}', space=vmem, size = 0x9000, scoped, tag = 'internal scratch']
  %s0 = inlined_call_operand.hbm [shape: bf16[128,128], index: 0, kind: input, shape index: {}]
  %s1 = inlined_call_operand.hbm [shape: bf16[3,128,128], index: 1, kind: input, shape index: {}]
  %s2 = inlined_call_operand.hbm [shape: f32[3,1,128], index: 2, kind: input, shape index: {}]
  %s3 = inlined_call_operand.hbm [shape: f32[128,128], index: 3, kind: output, shape index: {}]
  %s4 = sld [smem:[#allocation0]]
  $region34: #{tpu_custom_call.1} parent=0
    _
  %s6 = ssub.s32 1, %s4
  %s7 = scalar_select 0, %s6, %s4
  $region1: #{tpu_custom_call.1} parent=0
    #allocation2 [shape = 'u8[32768]{0}', space=vmem, size = 0x8000, scoped, tag = 'input window, operand 0, single buffered']
    #allocation3 [shape = 's32[1]{0}', space=sflag, size = 0x4, scoped, tag = 'scoped memory for tpu_custom_call.1']
    #allocation4 [shape = 's32[1]{0}', space=sflag, size = 0x4, scoped, tag = 'scoped memory for tpu_custom_call.1']
    #allocation5 [shape = 'u8[98304]{0}', space=vmem, size = 0x18000, scoped, tag = 'input window, operand 1, single buffered']
    #allocation6 [shape = 's32[1]{0}', space=sflag, size = 0x4, scoped, tag = 'scoped memory for tpu_custom_call.1']
    #allocation7 [shape = 'u8[1536]{0}', space=vmem, size = 0x800, scoped, tag = 'input window, operand 2, single buffered']
    #allocation8 [shape = 'u8[65536]{0}', space=vmem, size = 0x10000, scoped, tag = 'output window, operand 0, single buffered']
    %8 = vsyncpa [#allocation3], 0
    %9 = vsyncpa [#allocation6], 0
    %10 = vsyncpa [#allocation4], 0
    // Predicated region
    $region2: #{tpu_custom_call.1} parent=1 // pred_check
      _
    $region3: #{tpu_custom_call.1} parent=1 // pred_check_branch
      %12 = sbr.rel (0) target = $region5
    $region4: #{tpu_custom_call.1} parent=1 // pred_region
      %14 = vsyncadd [#allocation3], 0
      %s15 = sshll.u32 %s0, 4
      %s16 = int_to_ptr.hbm [resolvable:$true] %s15
      %s17 = sshll.u32 [#allocation2], 4
      %s18 = int_to_ptr.vmem [resolvable:$true] %s17
      %23 = dma.hbm_to_vmem [thread:$0]  %s16, 1024, %s18, [#allocation3], 64, 64, 4
    $region5: #{tpu_custom_call.1} parent=1 // pred_fallthru
      _
    // Predicated region
    $region6: #{tpu_custom_call.1} parent=1 // pred_check
      _
    $region7: #{tpu_custom_call.1} parent=1 // pred_check_branch
      %25 = sbr.rel (0) target = $region9
    $region8: #{tpu_custom_call.1} parent=1 // pred_region
      %27 = vsyncadd [#allocation6], 0
      %s28 = sshll.u32 %s1, 4
      %s29 = int_to_ptr.hbm [resolvable:$true] %s28
      %s30 = sshll.u32 [#allocation5], 4
      %s31 = int_to_ptr.vmem [resolvable:$true] %s30
      %36 = dma.hbm_to_vmem [thread:$0]  %s29, 3072, %s31, [#allocation6], 64, 64, 4
    $region9: #{tpu_custom_call.1} parent=1 // pred_fallthru
      _
    // Predicated region
    $region10: #{tpu_custom_call.1} parent=1 // pred_check
      _
    $region11: #{tpu_custom_call.1} parent=1 // pred_check_branch
      %38 = sbr.rel (0) target = $region13
    $region12: #{tpu_custom_call.1} parent=1 // pred_region
      %40 = vsyncadd [#allocation6], 0
      %s41 = sshll.u32 %s2, 4
      %s42 = int_to_ptr.hbm [resolvable:$true] %s41
      %s43 = sshll.u32 [#allocation7], 4
      %s44 = int_to_ptr.vmem [resolvable:$true] %s43
      %49 = dma.hbm_to_vmem [thread:$0]  %s42, 48, %s44, [#allocation6], 16, 16, 1
    $region13: #{tpu_custom_call.1} parent=1 // pred_fallthru
      _
    // Predicated region
    $region14: #{tpu_custom_call.1} parent=1 // pred_check
      _
    $region15: #{tpu_custom_call.1} parent=1 // pred_check_branch
      %51 = sbr.rel (0) target = $region17
    $region16: #{tpu_custom_call.1} parent=1 // pred_region
      %53 = dma.done [#allocation3], 1024
    $region17: #{tpu_custom_call.1} parent=1 // pred_fallthru
      _
    // Predicated region
    $region18: #{tpu_custom_call.1} parent=1 // pred_check
      _
    $region19: #{tpu_custom_call.1} parent=1 // pred_check_branch
      %55 = sbr.rel (0) target = $region21
    $region20: #{tpu_custom_call.1} parent=1 // pred_region
      %57 = dma.done [#allocation6], 3072
    $region21: #{tpu_custom_call.1} parent=1 // pred_fallthru
      _
    // Predicated region
    $region22: #{tpu_custom_call.1} parent=1 // pred_check
      _
    $region23: #{tpu_custom_call.1} parent=1 // pred_check_branch
      %59 = sbr.rel (0) target = $region25
    $region24: #{tpu_custom_call.1} parent=1 // pred_region
      %61 = dma.done [#allocation6], 48
    $region25: #{tpu_custom_call.1} parent=1 // pred_fallthru
      _
    %v62 = vld [vmem:[#allocation2] sm:$0xf]
    %v63 = vld [vmem:[#allocation2 + $0x4] sm:$0xf]
    %v64 = vld [vmem:[#allocation2 + $0x8] sm:$0xf]
    %v65 = vld [vmem:[#allocation2 + $0xc] sm:$0xf]
    %v66 = vld [vmem:[#allocation2 + $0x10] sm:$0xf]
    %v67 = vld [vmem:[#allocation2 + $0x14] sm:$0xf]
    %v68 = vld [vmem:[#allocation2 + $0x18] sm:$0xf]
    %v69 = vld [vmem:[#allocation2 + $0x1c] sm:$0xf]
    %v70 = vld [vmem:[#allocation2 + $0x20] sm:$0xf]
    %v71 = vld [vmem:[#allocation2 + $0x24] sm:$0xf]
    %v72 = vld [vmem:[#allocation2 + $0x28] sm:$0xf]
    %v73 = vld [vmem:[#allocation2 + $0x2c] sm:$0xf]
    %v74 = vld [vmem:[#allocation2 + $0x30] sm:$0xf]
    %v75 = vld [vmem:[#allocation2 + $0x34] sm:$0xf]
    %v76 = vld [vmem:[#allocation2 + $0x38] sm:$0xf]
    %v77 = vld [vmem:[#allocation2 + $0x3c] sm:$0xf]
    %v78 = vld [vmem:[#allocation5] sm:$0xf]
    %v79 = vld [vmem:[#allocation5 + $0x4] sm:$0xf]
    %v80 = vld [vmem:[#allocation5 + $0x8] sm:$0xf]
    %v81 = vld [vmem:[#allocation5 + $0xc] sm:$0xf]
    %v82 = vld [vmem:[#allocation5 + $0x10] sm:$0xf]
    %v83 = vld [vmem:[#allocation5 + $0x14] sm:$0xf]
    %v84 = vld [vmem:[#allocation5 + $0x18] sm:$0xf]
    %v85 = vld [vmem:[#allocation5 + $0x1c] sm:$0xf]
    %v86 = vld [vmem:[#allocation5 + $0x20] sm:$0xf]
    %v87 = vld [vmem:[#allocation5 + $0x24] sm:$0xf]
    %v88 = vld [vmem:[#allocation5 + $0x28] sm:$0xf]
    %v89 = vld [vmem:[#allocation5 + $0x2c] sm:$0xf]
    %v90 = vld [vmem:[#allocation5 + $0x30] sm:$0xf]
    %v91 = vld [vmem:[#allocation5 + $0x34] sm:$0xf]
    %v92 = vld [vmem:[#allocation5 + $0x38] sm:$0xf]
    %v93 = vld [vmem:[#allocation5 + $0x3c] sm:$0xf]
    %v94 = vld [vmem:[#allocation7] sm:$0x1]
    %v96 = vperm.slane %v94, 0
    %v114 = vunpack.c.l.b16 %v62
    %v115 = vunpack.c.l.b16 %v63
    %v116 = vunpack.c.l.b16 %v64
    %v117 = vunpack.c.l.b16 %v65
    %v118 = vunpack.c.l.b16 %v66
    %v119 = vunpack.c.l.b16 %v67
    %v120 = vunpack.c.l.b16 %v68
    %v121 = vunpack.c.l.b16 %v69
    %v122 = vunpack.c.l.b16 %v70
    %v123 = vunpack.c.l.b16 %v71
    %v124 = vunpack.c.l.b16 %v72
    %v125 = vunpack.c.l.b16 %v73
    %v126 = vunpack.c.l.b16 %v74
    %v127 = vunpack.c.l.b16 %v75
    %v128 = vunpack.c.l.b16 %v76
    %v129 = vunpack.c.l.b16 %v77
    %v130 = vpack.c.b16 %v115, %v114
    %v131 = vpack.c.b16 %v117, %v116
    %v132 = vpack.c.b16 %v119, %v118
    %v133 = vpack.c.b16 %v121, %v120
    %v134 = vpack.c.b16 %v123, %v122
    %v135 = vpack.c.b16 %v125, %v124
    %v136 = vpack.c.b16 %v127, %v126
    %v137 = vpack.c.b16 %v129, %v128
    %v162 = vunpack.c.l.b16 %v78
    %v163 = vunpack.c.l.b16 %v79
    %v164 = vunpack.c.l.b16 %v80
    %v165 = vunpack.c.l.b16 %v81
    %v166 = vunpack.c.l.b16 %v82
    %v167 = vunpack.c.l.b16 %v83
    %v168 = vunpack.c.l.b16 %v84
    %v169 = vunpack.c.l.b16 %v85
    %v170 = vunpack.c.l.b16 %v86
    %v171 = vunpack.c.l.b16 %v87
    %v172 = vunpack.c.l.b16 %v88
    %v173 = vunpack.c.l.b16 %v89
    %v174 = vunpack.c.l.b16 %v90
    %v175 = vunpack.c.l.b16 %v91
    %v176 = vunpack.c.l.b16 %v92
    %v177 = vunpack.c.l.b16 %v93
    %v178 = vpack.c.b16 %v163, %v162
    %v179 = vpack.c.b16 %v165, %v164
    %v180 = vpack.c.b16 %v167, %v166
    %v181 = vpack.c.b16 %v169, %v168
    %v182 = vpack.c.b16 %v171, %v170
    %v183 = vpack.c.b16 %v173, %v172
    %v184 = vpack.c.b16 %v175, %v174
    %v185 = vpack.c.b16 %v177, %v176
    %194 = vmatpush.bf16.msra.mxu0 %v185
    %195 = vmatpush.bf16.msra.mxu0 %v184
    %196 = vmatpush.bf16.msra.mxu0 %v183
    %197 = vmatpush.bf16.msra.mxu0 %v182
    %198 = vmatpush.bf16.msra.mxu0 %v181
    %199 = vmatpush.bf16.msra.mxu0 %v180
    %200 = vmatpush.bf16.msra.mxu0 %v179
    %201 = vmatpush.bf16.msra.mxu0 %v178
    %202 = vmatmul.bf16.gmra.mxu0 %v130
    %v203 = vpop.f32.mrf.mxu0
    %v204 = vadd.f32 %v96, %v203
    %v205 = vpop.f32.mrf.mxu0
    %v206 = vadd.f32 %v96, %v205
    %207 = vmatmul.bf16.gmra.mxu0 %v131
    %v208 = vpop.f32.mrf.mxu0
    %v209 = vadd.f32 %v96, %v208
    %v210 = vpop.f32.mrf.mxu0
    %v211 = vadd.f32 %v96, %v210
    %212 = vmatmul.bf16.gmra.mxu0 %v132
    %v213 = vpop.f32.mrf.mxu0
    %v214 = vadd.f32 %v96, %v213
    %v215 = vpop.f32.mrf.mxu0
    %v216 = vadd.f32 %v96, %v215
    %217 = vmatmul.bf16.gmra.mxu0 %v133
    %v218 = vpop.f32.mrf.mxu0
    %v219 = vadd.f32 %v96, %v218
    %v220 = vpop.f32.mrf.mxu0
    %v221 = vadd.f32 %v96, %v220
    %222 = vmatmul.bf16.gmra.mxu0 %v134
    %v223 = vpop.f32.mrf.mxu0
    %v224 = vadd.f32 %v96, %v223
    %v225 = vpop.f32.mrf.mxu0
    %v226 = vadd.f32 %v96, %v225
    %227 = vmatmul.bf16.gmra.mxu0 %v135
    %v228 = vpop.f32.mrf.mxu0
    %v229 = vadd.f32 %v96, %v228
    %v230 = vpop.f32.mrf.mxu0
    %v231 = vadd.f32 %v96, %v230
    %232 = vmatmul.bf16.gmra.mxu0 %v136
    %v233 = vpop.f32.mrf.mxu0
    %v234 = vadd.f32 %v96, %v233
    %v235 = vpop.f32.mrf.mxu0
    %v236 = vadd.f32 %v96, %v235
    %237 = vmatmul.bf16.gmra.mxu0 %v137
    %v238 = vpop.f32.mrf.mxu0
    %v239 = vadd.f32 %v96, %v238
    %v240 = vpop.f32.mrf.mxu0
    %v241 = vadd.f32 %v96, %v240
    %242 = vdwg.mxu0
    %v243 = vmax.f32 %v204, 0.0
    %v244 = vmax.f32 %v206, 0.0
    %v245 = vmax.f32 %v209, 0.0
    %v246 = vmax.f32 %v211, 0.0
    %v247 = vmax.f32 %v214, 0.0
    %v248 = vmax.f32 %v216, 0.0
    %v249 = vmax.f32 %v219, 0.0
    %v250 = vmax.f32 %v221, 0.0
    %v251 = vmax.f32 %v224, 0.0
    %v252 = vmax.f32 %v226, 0.0
    %v253 = vmax.f32 %v229, 0.0
    %v254 = vmax.f32 %v231, 0.0
    %v255 = vmax.f32 %v234, 0.0
    %v256 = vmax.f32 %v236, 0.0
    %v257 = vmax.f32 %v239, 0.0
    %v258 = vmax.f32 %v241, 0.0
    %v259 = vpack.c.bf16 %v244, %v243
    %v260 = vpack.c.bf16 %v246, %v245
    %v261 = vpack.c.bf16 %v248, %v247
    %v262 = vpack.c.bf16 %v250, %v249
    %v263 = vpack.c.bf16 %v252, %v251
    %v264 = vpack.c.bf16 %v254, %v253
    %v265 = vpack.c.bf16 %v256, %v255
    %v266 = vpack.c.bf16 %v258, %v257
    %s267 = scalar_lea.vmem [#allocation5], 64
    %v268 = vld [vmem:[%s267] sm:$0xf]
    %v269 = vld [vmem:[%s267 + $0x4] sm:$0xf]
    %v270 = vld [vmem:[%s267 + $0x8] sm:$0xf]
    %v271 = vld [vmem:[%s267 + $0xc] sm:$0xf]
    %v272 = vld [vmem:[%s267 + $0x10] sm:$0xf]
    %v273 = vld [vmem:[%s267 + $0x14] sm:$0xf]
    %v274 = vld [vmem:[%s267 + $0x18] sm:$0xf]
    %v275 = vld [vmem:[%s267 + $0x1c] sm:$0xf]
    %v276 = vld [vmem:[%s267 + $0x20] sm:$0xf]
    %v277 = vld [vmem:[%s267 + $0x24] sm:$0xf]
    %v278 = vld [vmem:[%s267 + $0x28] sm:$0xf]
    %v279 = vld [vmem:[%s267 + $0x2c] sm:$0xf]
    %v280 = vld [vmem:[%s267 + $0x30] sm:$0xf]
    %v281 = vld [vmem:[%s267 + $0x34] sm:$0xf]
    %v282 = vld [vmem:[%s267 + $0x38] sm:$0xf]
    %v283 = vld [vmem:[%s267 + $0x3c] sm:$0xf]
    %s284 = scalar_lea.vmem [#allocation7], 1
    %v285 = vld [vmem:[%s284] sm:$0x1]
    %v287 = vperm.slane %v285, 0
    %v305 = vunpack.c.l.b16 %v268
    %v306 = vunpack.c.l.b16 %v269
    %v307 = vunpack.c.l.b16 %v270
    %v308 = vunpack.c.l.b16 %v271
    %v309 = vunpack.c.l.b16 %v272
    %v310 = vunpack.c.l.b16 %v273
    %v311 = vunpack.c.l.b16 %v274
    %v312 = vunpack.c.l.b16 %v275
    %v313 = vunpack.c.l.b16 %v276
    %v314 = vunpack.c.l.b16 %v277
    %v315 = vunpack.c.l.b16 %v278
    %v316 = vunpack.c.l.b16 %v279
    %v317 = vunpack.c.l.b16 %v280
    %v318 = vunpack.c.l.b16 %v281
    %v319 = vunpack.c.l.b16 %v282
    %v320 = vunpack.c.l.b16 %v283
    %v321 = vpack.c.b16 %v306, %v305
    %v322 = vpack.c.b16 %v308, %v307
    %v323 = vpack.c.b16 %v310, %v309
    %v324 = vpack.c.b16 %v312, %v311
    %v325 = vpack.c.b16 %v314, %v313
    %v326 = vpack.c.b16 %v316, %v315
    %v327 = vpack.c.b16 %v318, %v317
    %v328 = vpack.c.b16 %v320, %v319
    %337 = vmatpush.bf16.msra.mxu0 %v328
    %338 = vmatpush.bf16.msra.mxu0 %v327
    %339 = vmatpush.bf16.msra.mxu0 %v326
    %340 = vmatpush.bf16.msra.mxu0 %v325
    %341 = vmatpush.bf16.msra.mxu0 %v324
    %342 = vmatpush.bf16.msra.mxu0 %v323
    %343 = vmatpush.bf16.msra.mxu0 %v322
    %344 = vmatpush.bf16.msra.mxu0 %v321
    %345 = vmatmul.bf16.gmra.mxu0 %v259
    %v346 = vpop.f32.mrf.mxu0
    %v347 = vadd.f32 %v287, %v346
    %v348 = vpop.f32.mrf.mxu0
    %v349 = vadd.f32 %v287, %v348
    %350 = vmatmul.bf16.gmra.mxu0 %v260
    %v351 = vpop.f32.mrf.mxu0
    %v352 = vadd.f32 %v287, %v351
    %v353 = vpop.f32.mrf.mxu0
    %v354 = vadd.f32 %v287, %v353
    %355 = vmatmul.bf16.gmra.mxu0 %v261
    %v356 = vpop.f32.mrf.mxu0
    %v357 = vadd.f32 %v287, %v356
    %v358 = vpop.f32.mrf.mxu0
    %v359 = vadd.f32 %v287, %v358
    %360 = vmatmul.bf16.gmra.mxu0 %v262
    %v361 = vpop.f32.mrf.mxu0
    %v362 = vadd.f32 %v287, %v361
    %v363 = vpop.f32.mrf.mxu0
    %v364 = vadd.f32 %v287, %v363
    %365 = vmatmul.bf16.gmra.mxu0 %v263
    %v366 = vpop.f32.mrf.mxu0
    %v367 = vadd.f32 %v287, %v366
    %v368 = vpop.f32.mrf.mxu0
    %v369 = vadd.f32 %v287, %v368
    %370 = vmatmul.bf16.gmra.mxu0 %v264
    %v371 = vpop.f32.mrf.mxu0
    %v372 = vadd.f32 %v287, %v371
    %v373 = vpop.f32.mrf.mxu0
    %v374 = vadd.f32 %v287, %v373
    %375 = vmatmul.bf16.gmra.mxu0 %v265
    %v376 = vpop.f32.mrf.mxu0
    %v377 = vadd.f32 %v287, %v376
    %v378 = vpop.f32.mrf.mxu0
    %v379 = vadd.f32 %v287, %v378
    %380 = vmatmul.bf16.gmra.mxu0 %v266
    %v381 = vpop.f32.mrf.mxu0
    %v382 = vadd.f32 %v287, %v381
    %v383 = vpop.f32.mrf.mxu0
    %v384 = vadd.f32 %v287, %v383
    %385 = vdwg.mxu0
    %v386 = vmax.f32 %v347, 0.0
    %v387 = vmax.f32 %v349, 0.0
    %v388 = vmax.f32 %v352, 0.0
    %v389 = vmax.f32 %v354, 0.0
    %v390 = vmax.f32 %v357, 0.0
    %v391 = vmax.f32 %v359, 0.0
    %v392 = vmax.f32 %v362, 0.0
    %v393 = vmax.f32 %v364, 0.0
    %v394 = vmax.f32 %v367, 0.0
    %v395 = vmax.f32 %v369, 0.0
    %v396 = vmax.f32 %v372, 0.0
    %v397 = vmax.f32 %v374, 0.0
    %v398 = vmax.f32 %v377, 0.0
    %v399 = vmax.f32 %v379, 0.0
    %v400 = vmax.f32 %v382, 0.0
    %v401 = vmax.f32 %v384, 0.0
    %v402 = vpack.c.bf16 %v387, %v386
    %v403 = vpack.c.bf16 %v389, %v388
    %v404 = vpack.c.bf16 %v391, %v390
    %v405 = vpack.c.bf16 %v393, %v392
    %v406 = vpack.c.bf16 %v395, %v394
    %v407 = vpack.c.bf16 %v397, %v396
    %v408 = vpack.c.bf16 %v399, %v398
    %v409 = vpack.c.bf16 %v401, %v400
    %s410 = scalar_lea.vmem [#allocation5], 128
    %v411 = vld [vmem:[%s410] sm:$0xf]
    %v412 = vld [vmem:[%s410 + $0x4] sm:$0xf]
    %v413 = vld [vmem:[%s410 + $0x8] sm:$0xf]
    %v414 = vld [vmem:[%s410 + $0xc] sm:$0xf]
    %v415 = vld [vmem:[%s410 + $0x10] sm:$0xf]
    %v416 = vld [vmem:[%s410 + $0x14] sm:$0xf]
    %v417 = vld [vmem:[%s410 + $0x18] sm:$0xf]
    %v418 = vld [vmem:[%s410 + $0x1c] sm:$0xf]
    %v419 = vld [vmem:[%s410 + $0x20] sm:$0xf]
    %v420 = vld [vmem:[%s410 + $0x24] sm:$0xf]
    %v421 = vld [vmem:[%s410 + $0x28] sm:$0xf]
    %v422 = vld [vmem:[%s410 + $0x2c] sm:$0xf]
    %v423 = vld [vmem:[%s410 + $0x30] sm:$0xf]
    %v424 = vld [vmem:[%s410 + $0x34] sm:$0xf]
    %v425 = vld [vmem:[%s410 + $0x38] sm:$0xf]
    %v426 = vld [vmem:[%s410 + $0x3c] sm:$0xf]
    %s427 = scalar_lea.vmem [#allocation7], 2
    %v428 = vld [vmem:[%s427] sm:$0x1]
    %v430 = vperm.slane %v428, 0
    %v448 = vunpack.c.l.b16 %v411
    %v449 = vunpack.c.l.b16 %v412
    %v450 = vunpack.c.l.b16 %v413
    %v451 = vunpack.c.l.b16 %v414
    %v452 = vunpack.c.l.b16 %v415
    %v453 = vunpack.c.l.b16 %v416
    %v454 = vunpack.c.l.b16 %v417
    %v455 = vunpack.c.l.b16 %v418
    %v456 = vunpack.c.l.b16 %v419
    %v457 = vunpack.c.l.b16 %v420
    %v458 = vunpack.c.l.b16 %v421
    %v459 = vunpack.c.l.b16 %v422
    %v460 = vunpack.c.l.b16 %v423
    %v461 = vunpack.c.l.b16 %v424
    %v462 = vunpack.c.l.b16 %v425
    %v463 = vunpack.c.l.b16 %v426
    %v464 = vpack.c.b16 %v449, %v448
    %v465 = vpack.c.b16 %v451, %v450
    %v466 = vpack.c.b16 %v453, %v452
    %v467 = vpack.c.b16 %v455, %v454
    %v468 = vpack.c.b16 %v457, %v456
    %v469 = vpack.c.b16 %v459, %v458
    %v470 = vpack.c.b16 %v461, %v460
    %v471 = vpack.c.b16 %v463, %v462
    %480 = vmatpush.bf16.msra.mxu0 %v471
    %481 = vmatpush.bf16.msra.mxu0 %v470
    %482 = vmatpush.bf16.msra.mxu0 %v469
    %483 = vmatpush.bf16.msra.mxu0 %v468
    %484 = vmatpush.bf16.msra.mxu0 %v467
    %485 = vmatpush.bf16.msra.mxu0 %v466
    %486 = vmatpush.bf16.msra.mxu0 %v465
    %487 = vmatpush.bf16.msra.mxu0 %v464
    %488 = vmatmul.bf16.gmra.mxu0 %v402
    %v489 = vpop.f32.mrf.mxu0
    %v490 = vadd.f32 %v430, %v489
    %v491 = vpop.f32.mrf.mxu0
    %v492 = vadd.f32 %v430, %v491
    %493 = vmatmul.bf16.gmra.mxu0 %v403
    %v494 = vpop.f32.mrf.mxu0
    %v495 = vadd.f32 %v430, %v494
    %v496 = vpop.f32.mrf.mxu0
    %v497 = vadd.f32 %v430, %v496
    %498 = vmatmul.bf16.gmra.mxu0 %v404
    %v499 = vpop.f32.mrf.mxu0
    %v500 = vadd.f32 %v430, %v499
    %v501 = vpop.f32.mrf.mxu0
    %v502 = vadd.f32 %v430, %v501
    %503 = vmatmul.bf16.gmra.mxu0 %v405
    %v504 = vpop.f32.mrf.mxu0
    %v505 = vadd.f32 %v430, %v504
    %v506 = vpop.f32.mrf.mxu0
    %v507 = vadd.f32 %v430, %v506
    %508 = vmatmul.bf16.gmra.mxu0 %v406
    %v509 = vpop.f32.mrf.mxu0
    %v510 = vadd.f32 %v430, %v509
    %v511 = vpop.f32.mrf.mxu0
    %v512 = vadd.f32 %v430, %v511
    %513 = vmatmul.bf16.gmra.mxu0 %v407
    %v514 = vpop.f32.mrf.mxu0
    %v515 = vadd.f32 %v430, %v514
    %v516 = vpop.f32.mrf.mxu0
    %v517 = vadd.f32 %v430, %v516
    %518 = vmatmul.bf16.gmra.mxu0 %v408
    %v519 = vpop.f32.mrf.mxu0
    %v520 = vadd.f32 %v430, %v519
    %v521 = vpop.f32.mrf.mxu0
    %v522 = vadd.f32 %v430, %v521
    %523 = vmatmul.bf16.gmra.mxu0 %v409
    %v524 = vpop.f32.mrf.mxu0
    %v525 = vadd.f32 %v430, %v524
    %v526 = vpop.f32.mrf.mxu0
    %v527 = vadd.f32 %v430, %v526
    %528 = vdwg.mxu0
    %v529 = vmax.f32 %v490, 0.0
    %v530 = vmax.f32 %v492, 0.0
    %v531 = vmax.f32 %v495, 0.0
    %v532 = vmax.f32 %v497, 0.0
    %v533 = vmax.f32 %v500, 0.0
    %v534 = vmax.f32 %v502, 0.0
    %v535 = vmax.f32 %v505, 0.0
    %v536 = vmax.f32 %v507, 0.0
    %v537 = vmax.f32 %v510, 0.0
    %v538 = vmax.f32 %v512, 0.0
    %v539 = vmax.f32 %v515, 0.0
    %v540 = vmax.f32 %v517, 0.0
    %v541 = vmax.f32 %v520, 0.0
    %v542 = vmax.f32 %v522, 0.0
    %v543 = vmax.f32 %v525, 0.0
    %v544 = vmax.f32 %v527, 0.0
    %545 = vst [vmem:[#allocation8] sm:$0xff] %v529
    %546 = vst [vmem:[#allocation8 + $0x8] sm:$0xff] %v530
    %547 = vst [vmem:[#allocation8 + $0x10] sm:$0xff] %v531
    %548 = vst [vmem:[#allocation8 + $0x18] sm:$0xff] %v532
    %549 = vst [vmem:[#allocation8 + $0x20] sm:$0xff] %v533
    %550 = vst [vmem:[#allocation8 + $0x28] sm:$0xff] %v534
    %551 = vst [vmem:[#allocation8 + $0x30] sm:$0xff] %v535
    %552 = vst [vmem:[#allocation8 + $0x38] sm:$0xff] %v536
    %553 = vst [vmem:[#allocation8 + $0x40] sm:$0xff] %v537
    %554 = vst [vmem:[#allocation8 + $0x48] sm:$0xff] %v538
    %555 = vst [vmem:[#allocation8 + $0x50] sm:$0xff] %v539
    %556 = vst [vmem:[#allocation8 + $0x58] sm:$0xff] %v540
    %557 = vst [vmem:[#allocation8 + $0x60] sm:$0xff] %v541
    %558 = vst [vmem:[#allocation8 + $0x68] sm:$0xff] %v542
    %559 = vst [vmem:[#allocation8 + $0x70] sm:$0xff] %v543
    %560 = vst [vmem:[#allocation8 + $0x78] sm:$0xff] %v544
    // Predicated region
    $region26: #{tpu_custom_call.1} parent=1 // pred_check
      _
    $region27: #{tpu_custom_call.1} parent=1 // pred_check_branch
      %562 = sbr.rel (0) target = $region29
    $region28: #{tpu_custom_call.1} parent=1 // pred_region
      %564 = vsyncadd [#allocation4], 0
      %s565 = sshll.u32 [#allocation8], 4
      %s566 = int_to_ptr.vmem [resolvable:$true] %s565
      %s567 = sshll.u32 %s3, 4
      %s568 = int_to_ptr.hbm [resolvable:$true] %s567
      %573 = dma.vmem_to_hbm [thread:$0]  %s566, 2048, %s568, [#allocation4], 128, 128, 8
    $region29: #{tpu_custom_call.1} parent=1 // pred_fallthru
      _
    // Predicated region
    $region30: #{tpu_custom_call.1} parent=1 // pred_check
      _
    $region31: #{tpu_custom_call.1} parent=1 // pred_check_branch
      %575 = sbr.rel (0) target = $region33
    $region32: #{tpu_custom_call.1} parent=1 // pred_region
      %577 = dma.done [#allocation4], 2048
    $region33: #{tpu_custom_call.1} parent=1 // pred_fallthru
      _
    %578 = vsyncpa [#allocation3], 1
    %579 = vsyncpa [#allocation6], 1
    %580 = vsyncpa [#allocation4], 1

// kernel: tpu_custom_call.1
$region0: #{tpu_custom_call.1}
  #allocation0 [shape = 'u32[]', space=smem, size = 0x4, offset = 0x4, fixed_abs, tag = 'smem constant byte address 0x4 - core index']
  #allocation1 [shape = 'u32[72,128]{1,0:T(1,128)}', space=vmem, size = 0x9000, scoped, tag = 'internal scratch']
  %s0 = inlined_call_operand.hbm [shape: bf16[128,128], index: 0, kind: input, shape index: {}]
  %s1 = inlined_call_operand.hbm [shape: bf16[3,128,128], index: 1, kind: input, shape index: {}]
  %s2 = inlined_call_operand.hbm [shape: f32[3,1,128], index: 2, kind: input, shape index: {}]
  %s3 = inlined_call_operand.hbm [shape: f32[128,128], index: 3, kind: output, shape index: {}]
  %s4 = sld [smem:[#allocation0]]
  $region34: #{tpu_custom_call.1} parent=0
    _
  %s6 = ssub.s32 1, %s4
  %s7 = scalar_select 0, %s6, %s4
  $region1: #{tpu_custom_call.1} parent=0
    #allocation2 [shape = 'u8[32768]{0}', space=vmem, size = 0x8000, scoped, tag = 'input window, operand 0, single buffered']
    #allocation3 [shape = 's32[1]{0}', space=sflag, size = 0x4, scoped, tag = 'scoped memory for tpu_custom_call.1']
    #allocation4 [shape = 's32[1]{0}', space=sflag, size = 0x4, scoped, tag = 'scoped memory for tpu_custom_call.1']
    #allocation5 [shape = 'u8[98304]{0}', space=vmem, size = 0x18000, scoped, tag = 'input window, operand 1, single buffered']
    #allocation6 [shape = 's32[1]{0}', space=sflag, size = 0x4, scoped, tag = 'scoped memory for tpu_custom_call.1']
    #allocation7 [shape = 'u8[1536]{0}', space=vmem, size = 0x800, scoped, tag = 'input window, operand 2, single buffered']
    #allocation8 [shape = 'u8[65536]{0}', space=vmem, size = 0x10000, scoped, tag = 'output window, operand 0, single buffered']
    %8 = vsyncpa [#allocation3], 0
    %9 = vsyncpa [#allocation6], 0
    %10 = vsyncpa [#allocation4], 0
    // Predicated region
    $region2: #{tpu_custom_call.1} parent=1 // pred_check
      _
    $region3: #{tpu_custom_call.1} parent=1 // pred_check_branch
      %12 = sbr.rel (0) target = $region5
    $region4: #{tpu_custom_call.1} parent=1 // pred_region
      %14 = vsyncadd [#allocation3], 0
      %s15 = sshll.u32 %s0, 4
      %s16 = int_to_ptr.hbm [resolvable:$true] %s15
      %s17 = sshll.u32 [#allocation2], 4
      %s18 = int_to_ptr.vmem [resolvable:$true] %s17
      %23 = dma.hbm_to_vmem [thread:$0]  %s16, 1024, %s18, [#allocation3], 64, 64, 4
    $region5: #{tpu_custom_call.1} parent=1 // pred_fallthru
      _
    // Predicated region
    $region6: #{tpu_custom_call.1} parent=1 // pred_check
      _
    $region7: #{tpu_custom_call.1} parent=1 // pred_check_branch
      %25 = sbr.rel (0) target = $region9
    $region8: #{tpu_custom_call.1} parent=1 // pred_region
      %27 = vsyncadd [#allocation6], 0
      %s28 = sshll.u32 %s1, 4
      %s29 = int_to_ptr.hbm [resolvable:$true] %s28
      %s30 = sshll.u32 [#allocation5], 4
      %s31 = int_to_ptr.vmem [resolvable:$true] %s30
      %36 = dma.hbm_to_vmem [thread:$0]  %s29, 3072, %s31, [#allocation6], 64, 64, 4
    $region9: #{tpu_custom_call.1} parent=1 // pred_fallthru
      _
    // Predicated region
    $region10: #{tpu_custom_call.1} parent=1 // pred_check
      _
    $region11: #{tpu_custom_call.1} parent=1 // pred_check_branch
      %38 = sbr.rel (0) target = $region13
    $region12: #{tpu_custom_call.1} parent=1 // pred_region
      %40 = vsyncadd [#allocation6], 0
      %s41 = sshll.u32 %s2, 4
      %s42 = int_to_ptr.hbm [resolvable:$true] %s41
      %s43 = sshll.u32 [#allocation7], 4
      %s44 = int_to_ptr.vmem [resolvable:$true] %s43
      %49 = dma.hbm_to_vmem [thread:$0]  %s42, 48, %s44, [#allocation6], 16, 16, 1
    $region13: #{tpu_custom_call.1} parent=1 // pred_fallthru
      _
    // Predicated region
    $region14: #{tpu_custom_call.1} parent=1 // pred_check
      _
    $region15: #{tpu_custom_call.1} parent=1 // pred_check_branch
      %51 = sbr.rel (0) target = $region17
    $region16: #{tpu_custom_call.1} parent=1 // pred_region
      %53 = dma.done [#allocation3], 1024
    $region17: #{tpu_custom_call.1} parent=1 // pred_fallthru
      _
    // Predicated region
    $region18: #{tpu_custom_call.1} parent=1 // pred_check
      _
    $region19: #{tpu_custom_call.1} parent=1 // pred_check_branch
      %55 = sbr.rel (0) target = $region21
    $region20: #{tpu_custom_call.1} parent=1 // pred_region
      %57 = dma.done [#allocation6], 3072
    $region21: #{tpu_custom_call.1} parent=1 // pred_fallthru
      _
    // Predicated region
    $region22: #{tpu_custom_call.1} parent=1 // pred_check
      _
    $region23: #{tpu_custom_call.1} parent=1 // pred_check_branch
      %59 = sbr.rel (0) target = $region25
    $region24: #{tpu_custom_call.1} parent=1 // pred_region
      %61 = dma.done [#allocation6], 48
    $region25: #{tpu_custom_call.1} parent=1 // pred_fallthru
      _
    %v62 = vld [vmem:[#allocation2] sm:$0xf]
    %v63 = vld [vmem:[#allocation2 + $0x4] sm:$0xf]
    %v64 = vld [vmem:[#allocation2 + $0x8] sm:$0xf]
    %v65 = vld [vmem:[#allocation2 + $0xc] sm:$0xf]
    %v66 = vld [vmem:[#allocation2 + $0x10] sm:$0xf]
    %v67 = vld [vmem:[#allocation2 + $0x14] sm:$0xf]
    %v68 = vld [vmem:[#allocation2 + $0x18] sm:$0xf]
    %v69 = vld [vmem:[#allocation2 + $0x1c] sm:$0xf]
    %v70 = vld [vmem:[#allocation2 + $0x20] sm:$0xf]
    %v71 = vld [vmem:[#allocation2 + $0x24] sm:$0xf]
    %v72 = vld [vmem:[#allocation2 + $0x28] sm:$0xf]
    %v73 = vld [vmem:[#allocation2 + $0x2c] sm:$0xf]
    %v74 = vld [vmem:[#allocation2 + $0x30] sm:$0xf]
    %v75 = vld [vmem:[#allocation2 + $0x34] sm:$0xf]
    %v76 = vld [vmem:[#allocation2 + $0x38] sm:$0xf]
    %v77 = vld [vmem:[#allocation2 + $0x3c] sm:$0xf]
    %v78 = vld [vmem:[#allocation5] sm:$0xf]
    %v79 = vld [vmem:[#allocation5 + $0x4] sm:$0xf]
    %v80 = vld [vmem:[#allocation5 + $0x8] sm:$0xf]
    %v81 = vld [vmem:[#allocation5 + $0xc] sm:$0xf]
    %v82 = vld [vmem:[#allocation5 + $0x10] sm:$0xf]
    %v83 = vld [vmem:[#allocation5 + $0x14] sm:$0xf]
    %v84 = vld [vmem:[#allocation5 + $0x18] sm:$0xf]
    %v85 = vld [vmem:[#allocation5 + $0x1c] sm:$0xf]
    %v86 = vld [vmem:[#allocation5 + $0x20] sm:$0xf]
    %v87 = vld [vmem:[#allocation5 + $0x24] sm:$0xf]
    %v88 = vld [vmem:[#allocation5 + $0x28] sm:$0xf]
    %v89 = vld [vmem:[#allocation5 + $0x2c] sm:$0xf]
    %v90 = vld [vmem:[#allocation5 + $0x30] sm:$0xf]
    %v91 = vld [vmem:[#allocation5 + $0x34] sm:$0xf]
    %v92 = vld [vmem:[#allocation5 + $0x38] sm:$0xf]
    %v93 = vld [vmem:[#allocation5 + $0x3c] sm:$0xf]
    %v94 = vld [vmem:[#allocation7] sm:$0x1]
    %v96 = vperm.slane %v94, 0
    %v114 = vunpack.c.l.b16 %v62
    %v115 = vunpack.c.l.b16 %v63
    %v116 = vunpack.c.l.b16 %v64
    %v117 = vunpack.c.l.b16 %v65
    %v118 = vunpack.c.l.b16 %v66
    %v119 = vunpack.c.l.b16 %v67
    %v120 = vunpack.c.l.b16 %v68
    %v121 = vunpack.c.l.b16 %v69
    %v122 = vunpack.c.l.b16 %v70
    %v123 = vunpack.c.l.b16 %v71
    %v124 = vunpack.c.l.b16 %v72
    %v125 = vunpack.c.l.b16 %v73
    %v126 = vunpack.c.l.b16 %v74
    %v127 = vunpack.c.l.b16 %v75
    %v128 = vunpack.c.l.b16 %v76
    %v129 = vunpack.c.l.b16 %v77
    %v130 = vpack.c.b16 %v115, %v114
    %v131 = vpack.c.b16 %v117, %v116
    %v132 = vpack.c.b16 %v119, %v118
    %v133 = vpack.c.b16 %v121, %v120
    %v134 = vpack.c.b16 %v123, %v122
    %v135 = vpack.c.b16 %v125, %v124
    %v136 = vpack.c.b16 %v127, %v126
    %v137 = vpack.c.b16 %v129, %v128
    %v162 = vunpack.c.l.b16 %v78
    %v163 = vunpack.c.l.b16 %v79
    %v164 = vunpack.c.l.b16 %v80
    %v165 = vunpack.c.l.b16 %v81
    %v166 = vunpack.c.l.b16 %v82
    %v167 = vunpack.c.l.b16 %v83
    %v168 = vunpack.c.l.b16 %v84
    %v169 = vunpack.c.l.b16 %v85
    %v170 = vunpack.c.l.b16 %v86
    %v171 = vunpack.c.l.b16 %v87
    %v172 = vunpack.c.l.b16 %v88
    %v173 = vunpack.c.l.b16 %v89
    %v174 = vunpack.c.l.b16 %v90
    %v175 = vunpack.c.l.b16 %v91
    %v176 = vunpack.c.l.b16 %v92
    %v177 = vunpack.c.l.b16 %v93
    %v178 = vpack.c.b16 %v163, %v162
    %v179 = vpack.c.b16 %v165, %v164
    %v180 = vpack.c.b16 %v167, %v166
    %v181 = vpack.c.b16 %v169, %v168
    %v182 = vpack.c.b16 %v171, %v170
    %v183 = vpack.c.b16 %v173, %v172
    %v184 = vpack.c.b16 %v175, %v174
    %v185 = vpack.c.b16 %v177, %v176
    %194 = vmatpush.bf16.msra.mxu0 %v185
    %195 = vmatpush.bf16.msra.mxu0 %v184
    %196 = vmatpush.bf16.msra.mxu0 %v183
    %197 = vmatpush.bf16.msra.mxu0 %v182
    %198 = vmatpush.bf16.msra.mxu0 %v181
    %199 = vmatpush.bf16.msra.mxu0 %v180
    %200 = vmatpush.bf16.msra.mxu0 %v179
    %201 = vmatpush.bf16.msra.mxu0 %v178
    %202 = vmatmul.bf16.gmra.mxu0 %v130
    %v203 = vpop.f32.mrf.mxu0
    %v204 = vadd.f32 %v96, %v203
    %v205 = vpop.f32.mrf.mxu0
    %v206 = vadd.f32 %v96, %v205
    %207 = vmatmul.bf16.gmra.mxu0 %v131
    %v208 = vpop.f32.mrf.mxu0
    %v209 = vadd.f32 %v96, %v208
    %v210 = vpop.f32.mrf.mxu0
    %v211 = vadd.f32 %v96, %v210
    %212 = vmatmul.bf16.gmra.mxu0 %v132
    %v213 = vpop.f32.mrf.mxu0
    %v214 = vadd.f32 %v96, %v213
    %v215 = vpop.f32.mrf.mxu0
    %v216 = vadd.f32 %v96, %v215
    %217 = vmatmul.bf16.gmra.mxu0 %v133
    %v218 = vpop.f32.mrf.mxu0
    %v219 = vadd.f32 %v96, %v218
    %v220 = vpop.f32.mrf.mxu0
    %v221 = vadd.f32 %v96, %v220
    %222 = vmatmul.bf16.gmra.mxu0 %v134
    %v223 = vpop.f32.mrf.mxu0
    %v224 = vadd.f32 %v96, %v223
    %v225 = vpop.f32.mrf.mxu0
    %v226 = vadd.f32 %v96, %v225
    %227 = vmatmul.bf16.gmra.mxu0 %v135
    %v228 = vpop.f32.mrf.mxu0
    %v229 = vadd.f32 %v96, %v228
    %v230 = vpop.f32.mrf.mxu0
    %v231 = vadd.f32 %v96, %v230
    %232 = vmatmul.bf16.gmra.mxu0 %v136
    %v233 = vpop.f32.mrf.mxu0
    %v234 = vadd.f32 %v96, %v233
    %v235 = vpop.f32.mrf.mxu0
    %v236 = vadd.f32 %v96, %v235
    %237 = vmatmul.bf16.gmra.mxu0 %v137
    %v238 = vpop.f32.mrf.mxu0
    %v239 = vadd.f32 %v96, %v238
    %v240 = vpop.f32.mrf.mxu0
    %v241 = vadd.f32 %v96, %v240
    %242 = vdwg.mxu0
    %v243 = vmax.f32 %v204, 0.0
    %v244 = vmax.f32 %v206, 0.0
    %v245 = vmax.f32 %v209, 0.0
    %v246 = vmax.f32 %v211, 0.0
    %v247 = vmax.f32 %v214, 0.0
    %v248 = vmax.f32 %v216, 0.0
    %v249 = vmax.f32 %v219, 0.0
    %v250 = vmax.f32 %v221, 0.0
    %v251 = vmax.f32 %v224, 0.0
    %v252 = vmax.f32 %v226, 0.0
    %v253 = vmax.f32 %v229, 0.0
    %v254 = vmax.f32 %v231, 0.0
    %v255 = vmax.f32 %v234, 0.0
    %v256 = vmax.f32 %v236, 0.0
    %v257 = vmax.f32 %v239, 0.0
    %v258 = vmax.f32 %v241, 0.0
    %v259 = vpack.c.bf16 %v244, %v243
    %v260 = vpack.c.bf16 %v246, %v245
    %v261 = vpack.c.bf16 %v248, %v247
    %v262 = vpack.c.bf16 %v250, %v249
    %v263 = vpack.c.bf16 %v252, %v251
    %v264 = vpack.c.bf16 %v254, %v253
    %v265 = vpack.c.bf16 %v256, %v255
    %v266 = vpack.c.bf16 %v258, %v257
    %s267 = scalar_lea.vmem [#allocation5], 64
    %v268 = vld [vmem:[%s267] sm:$0xf]
    %v269 = vld [vmem:[%s267 + $0x4] sm:$0xf]
    %v270 = vld [vmem:[%s267 + $0x8] sm:$0xf]
    %v271 = vld [vmem:[%s267 + $0xc] sm:$0xf]
    %v272 = vld [vmem:[%s267 + $0x10] sm:$0xf]
    %v273 = vld [vmem:[%s267 + $0x14] sm:$0xf]
    %v274 = vld [vmem:[%s267 + $0x18] sm:$0xf]
    %v275 = vld [vmem:[%s267 + $0x1c] sm:$0xf]
    %v276 = vld [vmem:[%s267 + $0x20] sm:$0xf]
    %v277 = vld [vmem:[%s267 + $0x24] sm:$0xf]
    %v278 = vld [vmem:[%s267 + $0x28] sm:$0xf]
    %v279 = vld [vmem:[%s267 + $0x2c] sm:$0xf]
    %v280 = vld [vmem:[%s267 + $0x30] sm:$0xf]
    %v281 = vld [vmem:[%s267 + $0x34] sm:$0xf]
    %v282 = vld [vmem:[%s267 + $0x38] sm:$0xf]
    %v283 = vld [vmem:[%s267 + $0x3c] sm:$0xf]
    %s284 = scalar_lea.vmem [#allocation7], 1
    %v285 = vld [vmem:[%s284] sm:$0x1]
    %v287 = vperm.slane %v285, 0
    %v305 = vunpack.c.l.b16 %v268
    %v306 = vunpack.c.l.b16 %v269
    %v307 = vunpack.c.l.b16 %v270
    %v308 = vunpack.c.l.b16 %v271
    %v309 = vunpack.c.l.b16 %v272
    %v310 = vunpack.c.l.b16 %v273
    %v311 = vunpack.c.l.b16 %v274
    %v312 = vunpack.c.l.b16 %v275
    %v313 = vunpack.c.l.b16 %v276
    %v314 = vunpack.c.l.b16 %v277
    %v315 = vunpack.c.l.b16 %v278
    %v316 = vunpack.c.l.b16 %v279
    %v317 = vunpack.c.l.b16 %v280
    %v318 = vunpack.c.l.b16 %v281
    %v319 = vunpack.c.l.b16 %v282
    %v320 = vunpack.c.l.b16 %v283
    %v321 = vpack.c.b16 %v306, %v305
    %v322 = vpack.c.b16 %v308, %v307
    %v323 = vpack.c.b16 %v310, %v309
    %v324 = vpack.c.b16 %v312, %v311
    %v325 = vpack.c.b16 %v314, %v313
    %v326 = vpack.c.b16 %v316, %v315
    %v327 = vpack.c.b16 %v318, %v317
    %v328 = vpack.c.b16 %v320, %v319
    %337 = vmatpush.bf16.msra.mxu0 %v328
    %338 = vmatpush.bf16.msra.mxu0 %v327
    %339 = vmatpush.bf16.msra.mxu0 %v326
    %340 = vmatpush.bf16.msra.mxu0 %v325
    %341 = vmatpush.bf16.msra.mxu0 %v324
    %342 = vmatpush.bf16.msra.mxu0 %v323
    %343 = vmatpush.bf16.msra.mxu0 %v322
    %344 = vmatpush.bf16.msra.mxu0 %v321
    %345 = vmatmul.bf16.gmra.mxu0 %v259
    %v346 = vpop.f32.mrf.mxu0
    %v347 = vadd.f32 %v287, %v346
    %v348 = vpop.f32.mrf.mxu0
    %v349 = vadd.f32 %v287, %v348
    %350 = vmatmul.bf16.gmra.mxu0 %v260
    %v351 = vpop.f32.mrf.mxu0
    %v352 = vadd.f32 %v287, %v351
    %v353 = vpop.f32.mrf.mxu0
    %v354 = vadd.f32 %v287, %v353
    %355 = vmatmul.bf16.gmra.mxu0 %v261
    %v356 = vpop.f32.mrf.mxu0
    %v357 = vadd.f32 %v287, %v356
    %v358 = vpop.f32.mrf.mxu0
    %v359 = vadd.f32 %v287, %v358
    %360 = vmatmul.bf16.gmra.mxu0 %v262
    %v361 = vpop.f32.mrf.mxu0
    %v362 = vadd.f32 %v287, %v361
    %v363 = vpop.f32.mrf.mxu0
    %v364 = vadd.f32 %v287, %v363
    %365 = vmatmul.bf16.gmra.mxu0 %v263
    %v366 = vpop.f32.mrf.mxu0
    %v367 = vadd.f32 %v287, %v366
    %v368 = vpop.f32.mrf.mxu0
    %v369 = vadd.f32 %v287, %v368
    %370 = vmatmul.bf16.gmra.mxu0 %v264
    %v371 = vpop.f32.mrf.mxu0
    %v372 = vadd.f32 %v287, %v371
    %v373 = vpop.f32.mrf.mxu0
    %v374 = vadd.f32 %v287, %v373
    %375 = vmatmul.bf16.gmra.mxu0 %v265
    %v376 = vpop.f32.mrf.mxu0
    %v377 = vadd.f32 %v287, %v376
    %v378 = vpop.f32.mrf.mxu0
    %v379 = vadd.f32 %v287, %v378
    %380 = vmatmul.bf16.gmra.mxu0 %v266
    %v381 = vpop.f32.mrf.mxu0
    %v382 = vadd.f32 %v287, %v381
    %v383 = vpop.f32.mrf.mxu0
    %v384 = vadd.f32 %v287, %v383
    %385 = vdwg.mxu0
    %v386 = vmax.f32 %v347, 0.0
    %v387 = vmax.f32 %v349, 0.0
    %v388 = vmax.f32 %v352, 0.0
    %v389 = vmax.f32 %v354, 0.0
    %v390 = vmax.f32 %v357, 0.0
    %v391 = vmax.f32 %v359, 0.0
    %v392 = vmax.f32 %v362, 0.0
    %v393 = vmax.f32 %v364, 0.0
    %v394 = vmax.f32 %v367, 0.0
    %v395 = vmax.f32 %v369, 0.0
    %v396 = vmax.f32 %v372, 0.0
    %v397 = vmax.f32 %v374, 0.0
    %v398 = vmax.f32 %v377, 0.0
    %v399 = vmax.f32 %v379, 0.0
    %v400 = vmax.f32 %v382, 0.0
    %v401 = vmax.f32 %v384, 0.0
    %v402 = vpack.c.bf16 %v387, %v386
    %v403 = vpack.c.bf16 %v389, %v388
    %v404 = vpack.c.bf16 %v391, %v390
    %v405 = vpack.c.bf16 %v393, %v392
    %v406 = vpack.c.bf16 %v395, %v394
    %v407 = vpack.c.bf16 %v397, %v396
    %v408 = vpack.c.bf16 %v399, %v398
    %v409 = vpack.c.bf16 %v401, %v400
    %s410 = scalar_lea.vmem [#allocation5], 128
    %v411 = vld [vmem:[%s410] sm:$0xf]
    %v412 = vld [vmem:[%s410 + $0x4] sm:$0xf]
    %v413 = vld [vmem:[%s410 + $0x8] sm:$0xf]
    %v414 = vld [vmem:[%s410 + $0xc] sm:$0xf]
    %v415 = vld [vmem:[%s410 + $0x10] sm:$0xf]
    %v416 = vld [vmem:[%s410 + $0x14] sm:$0xf]
    %v417 = vld [vmem:[%s410 + $0x18] sm:$0xf]
    %v418 = vld [vmem:[%s410 + $0x1c] sm:$0xf]
    %v419 = vld [vmem:[%s410 + $0x20] sm:$0xf]
    %v420 = vld [vmem:[%s410 + $0x24] sm:$0xf]
    %v421 = vld [vmem:[%s410 + $0x28] sm:$0xf]
    %v422 = vld [vmem:[%s410 + $0x2c] sm:$0xf]
    %v423 = vld [vmem:[%s410 + $0x30] sm:$0xf]
    %v424 = vld [vmem:[%s410 + $0x34] sm:$0xf]
    %v425 = vld [vmem:[%s410 + $0x38] sm:$0xf]
    %v426 = vld [vmem:[%s410 + $0x3c] sm:$0xf]
    %s427 = scalar_lea.vmem [#allocation7], 2
    %v428 = vld [vmem:[%s427] sm:$0x1]
    %v430 = vperm.slane %v428, 0
    %v448 = vunpack.c.l.b16 %v411
    %v449 = vunpack.c.l.b16 %v412
    %v450 = vunpack.c.l.b16 %v413
    %v451 = vunpack.c.l.b16 %v414
    %v452 = vunpack.c.l.b16 %v415
    %v453 = vunpack.c.l.b16 %v416
    %v454 = vunpack.c.l.b16 %v417
    %v455 = vunpack.c.l.b16 %v418
    %v456 = vunpack.c.l.b16 %v419
    %v457 = vunpack.c.l.b16 %v420
    %v458 = vunpack.c.l.b16 %v421
    %v459 = vunpack.c.l.b16 %v422
    %v460 = vunpack.c.l.b16 %v423
    %v461 = vunpack.c.l.b16 %v424
    %v462 = vunpack.c.l.b16 %v425
    %v463 = vunpack.c.l.b16 %v426
    %v464 = vpack.c.b16 %v449, %v448
    %v465 = vpack.c.b16 %v451, %v450
    %v466 = vpack.c.b16 %v453, %v452
    %v467 = vpack.c.b16 %v455, %v454
    %v468 = vpack.c.b16 %v457, %v456
    %v469 = vpack.c.b16 %v459, %v458
    %v470 = vpack.c.b16 %v461, %v460
    %v471 = vpack.c.b16 %v463, %v462
    %480 = vmatpush.bf16.msra.mxu0 %v471
    %481 = vmatpush.bf16.msra.mxu0 %v470
    %482 = vmatpush.bf16.msra.mxu0 %v469
    %483 = vmatpush.bf16.msra.mxu0 %v468
    %484 = vmatpush.bf16.msra.mxu0 %v467
    %485 = vmatpush.bf16.msra.mxu0 %v466
    %486 = vmatpush.bf16.msra.mxu0 %v465
    %487 = vmatpush.bf16.msra.mxu0 %v464
    %488 = vmatmul.bf16.gmra.mxu0 %v402
    %v489 = vpop.f32.mrf.mxu0
    %v490 = vadd.f32 %v430, %v489
    %v491 = vpop.f32.mrf.mxu0
    %v492 = vadd.f32 %v430, %v491
    %493 = vmatmul.bf16.gmra.mxu0 %v403
    %v494 = vpop.f32.mrf.mxu0
    %v495 = vadd.f32 %v430, %v494
    %v496 = vpop.f32.mrf.mxu0
    %v497 = vadd.f32 %v430, %v496
    %498 = vmatmul.bf16.gmra.mxu0 %v404
    %v499 = vpop.f32.mrf.mxu0
    %v500 = vadd.f32 %v430, %v499
    %v501 = vpop.f32.mrf.mxu0
    %v502 = vadd.f32 %v430, %v501
    %503 = vmatmul.bf16.gmra.mxu0 %v405
    %v504 = vpop.f32.mrf.mxu0
    %v505 = vadd.f32 %v430, %v504
    %v506 = vpop.f32.mrf.mxu0
    %v507 = vadd.f32 %v430, %v506
    %508 = vmatmul.bf16.gmra.mxu0 %v406
    %v509 = vpop.f32.mrf.mxu0
    %v510 = vadd.f32 %v430, %v509
    %v511 = vpop.f32.mrf.mxu0
    %v512 = vadd.f32 %v430, %v511
    %513 = vmatmul.bf16.gmra.mxu0 %v407
    %v514 = vpop.f32.mrf.mxu0
    %v515 = vadd.f32 %v430, %v514
    %v516 = vpop.f32.mrf.mxu0
    %v517 = vadd.f32 %v430, %v516
    %518 = vmatmul.bf16.gmra.mxu0 %v408
    %v519 = vpop.f32.mrf.mxu0
    %v520 = vadd.f32 %v430, %v519
    %v521 = vpop.f32.mrf.mxu0
    %v522 = vadd.f32 %v430, %v521
    %523 = vmatmul.bf16.gmra.mxu0 %v409
    %v524 = vpop.f32.mrf.mxu0
    %v525 = vadd.f32 %v430, %v524
    %v526 = vpop.f32.mrf.mxu0
    %v527 = vadd.f32 %v430, %v526
    %528 = vdwg.mxu0
    %v529 = vmax.f32 %v490, 0.0
    %v530 = vmax.f32 %v492, 0.0
    %v531 = vmax.f32 %v495, 0.0
    %v532 = vmax.f32 %v497, 0.0
    %v533 = vmax.f32 %v500, 0.0
    %v534 = vmax.f32 %v502, 0.0
    %v535 = vmax.f32 %v505, 0.0
    %v536 = vmax.f32 %v507, 0.0
    %v537 = vmax.f32 %v510, 0.0
    %v538 = vmax.f32 %v512, 0.0
    %v539 = vmax.f32 %v515, 0.0
    %v540 = vmax.f32 %v517, 0.0
    %v541 = vmax.f32 %v520, 0.0
    %v542 = vmax.f32 %v522, 0.0
    %v543 = vmax.f32 %v525, 0.0
    %v544 = vmax.f32 %v527, 0.0
    %545 = vst [vmem:[#allocation8] sm:$0xff] %v529
    %546 = vst [vmem:[#allocation8 + $0x8] sm:$0xff] %v530
    %547 = vst [vmem:[#allocation8 + $0x10] sm:$0xff] %v531
    %548 = vst [vmem:[#allocation8 + $0x18] sm:$0xff] %v532
    %549 = vst [vmem:[#allocation8 + $0x20] sm:$0xff] %v533
    %550 = vst [vmem:[#allocation8 + $0x28] sm:$0xff] %v534
    %551 = vst [vmem:[#allocation8 + $0x30] sm:$0xff] %v535
    %552 = vst [vmem:[#allocation8 + $0x38] sm:$0xff] %v536
    %553 = vst [vmem:[#allocation8 + $0x40] sm:$0xff] %v537
    %554 = vst [vmem:[#allocation8 + $0x48] sm:$0xff] %v538
    %555 = vst [vmem:[#allocation8 + $0x50] sm:$0xff] %v539
    %556 = vst [vmem:[#allocation8 + $0x58] sm:$0xff] %v540
    %557 = vst [vmem:[#allocation8 + $0x60] sm:$0xff] %v541
    %558 = vst [vmem:[#allocation8 + $0x68] sm:$0xff] %v542
    %559 = vst [vmem:[#allocation8 + $0x70] sm:$0xff] %v543
    %560 = vst [vmem:[#allocation8 + $0x78] sm:$0xff] %v544
    // Predicated region
    $region26: #{tpu_custom_call.1} parent=1 // pred_check
      _
    $region27: #{tpu_custom_call.1} parent=1 // pred_check_branch
      %562 = sbr.rel (0) target = $region29
    $region28: #{tpu_custom_call.1} parent=1 // pred_region
      %564 = vsyncadd [#allocation4], 0
      %s565 = sshll.u32 [#allocation8], 4
      %s566 = int_to_ptr.vmem [resolvable:$true] %s565
      %s567 = sshll.u32 %s3, 4
      %s568 = int_to_ptr.hbm [resolvable:$true] %s567
      %573 = dma.vmem_to_hbm [thread:$0]  %s566, 2048, %s568, [#allocation4], 128, 128, 8
    $region29: #{tpu_custom_call.1} parent=1 // pred_fallthru
      _
    // Predicated region
    $region30: #{tpu_custom_call.1} parent=1 // pred_check
      _
    $region31: #{tpu_custom_call.1} parent=1 // pred_check_branch
      %575 = sbr.rel (0) target = $region33
    $region32: #{tpu_custom_call.1} parent=1 // pred_region
      %577 = dma.done [#allocation4], 2048
    $region33: #{tpu_custom_call.1} parent=1 // pred_fallthru
      _
    %578 = vsyncpa [#allocation3], 1
    %579 = vsyncpa [#allocation6], 1
    %580 = vsyncpa [#allocation4], 1

</llo_original>
